<compile_context>
chip_gen: v6e
topology: v6e:2x2x1
jax: 0.10.0
libtpu: 0.0.40
codegen_flags: <defaults>
</compile_context>

<pallas_src>
import math

import jax
import jax.numpy as jnp
from jax.experimental import pallas as pl
from jax.experimental.pallas import tpu as pltpu


# ----------------------------------------------------------------------------
# "Module" definition: deterministic cases & default (synthetic, no checkpoint)
# ----------------------------------------------------------------------------
CASES = {
    0: lambda x: x * x,              # square
    1: lambda x: jnp.exp(x),         # exp (EUP)  -- evaluated on all lanes; any
                                     # inf in unselected lanes is discarded by
                                     # the select (no NaN/inf propagation).
    2: lambda x: 2.0 * x + 0.5,      # affine with Python-float params
}
DEFAULT = lambda x: -x               # default branch
# TODO(synk): the PyTorch Match accepts arbitrary user callables; here the
# case table is a fixed set of elementwise functions baked into the kernel.

# The fallback path stores the key as int8; case ids must fit.
assert all(isinstance(k, int) and -128 <= k <= 127 for k in CASES)


# ----------------------------------------------------------------------------
# Pallas kernel: piecewise select on one (rows, lanes) tile.
# key_ref is either (rows, 1) int32 (fast path) or (rows, lanes) int8/int32.
# ----------------------------------------------------------------------------
def _match_kernel(key_ref, x_ref, out_ref):
    x = x_ref[...].astype(jnp.float32)           # cast in vregs (VPU slack)
    key = key_ref[...].astype(jnp.int32)
    if key.shape != x.shape:                     # broadcast once, not per-case
        key = jnp.broadcast_to(key, x.shape)
    out = DEFAULT(x)
    # Later cases overwrite earlier ones, matching the PyTorch loop order
    # (keys are mutually exclusive anyway: key == k).
    for k, fn in CASES.items():
        out = jnp.where(key == k, fn(x), out)    # k is a Python int literal
    out_ref[...] = out.astype(out_ref.dtype)


# ----------------------------------------------------------------------------
# Helpers
# ----------------------------------------------------------------------------
def _round_up(n, m):
    return -(-n // m) * m


def _round_down(n, m):
    return (n // m) * m


def _row_align(*dtypes):
    """Second-minor alignment required by the narrowest dtype in the tiles."""
    return max(8, max(32 // jnp.dtype(d).itemsize for d in dtypes))


def _choose_row_block(rows, bytes_per_row, row_align,
                      target_step_bytes=4 << 20, target_steps=8):
    """Row block so that (a) one step's tiles (x+out+key) stay near
    target_step_bytes (≈8 MiB double-buffered: safe on v5e's 16 MiB scoped
    default and v7x's 64 MiB physical VMEM), (b) the grid has ~target_steps
    steps for pipeline steady state, (c) the grid length is even when possible
    (v7x: 2 TensorCores share the 'parallel' axis).  Blocks need not divide
    `rows`; the caller uses pl.cdiv and Pallas masks the partial last block."""
    if rows <= row_align:
        return rows                                       # full-extent block
    budget_rows = max(row_align,
                      _round_down(target_step_bytes // max(bytes_per_row, 1),
                                  row_align))
    steps_rows = max(row_align, _round_up(-(-rows // target_steps), row_align))
    row_blk = max(row_align, min(budget_rows, steps_rows))
    row_blk = min(row_blk, _round_up(rows, row_align))
    grid = -(-rows // row_blk)
    if grid > 1 and grid % 2 == 1:                        # prefer even grid
        cand = _round_up(-(-rows // (grid + 1)), row_align)
        if cand >= row_align and (-(-rows // cand)) % 2 == 0:
            row_blk = cand
    return row_blk


def _run(key2d, x2d, row_blk, out_dtype):
    rows, lanes = x2d.shape
    krows, klanes = key2d.shape
    grid = (pl.cdiv(rows, row_blk),)
    total = rows * lanes
    cost = pl.CostEstimate(
        flops=int((3 * len(CASES) + 2) * total),
        transcendentals=int(total),
        bytes_accessed=int(total * (x2d.dtype.itemsize
                                    + jnp.dtype(out_dtype).itemsize)
                           + krows * klanes * key2d.dtype.itemsize),
    )
    return pl.pallas_call(
        _match_kernel,
        out_shape=jax.ShapeDtypeStruct((rows, lanes), out_dtype),
        grid_spec=pltpu.PrefetchScalarGridSpec(
            num_scalar_prefetch=0,
            grid=grid,
            in_specs=[
                pl.BlockSpec((row_blk, klanes), lambda i: (i, 0)),
                pl.BlockSpec((row_blk, lanes), lambda i: (i, 0)),
            ],
            out_specs=pl.BlockSpec((row_blk, lanes), lambda i: (i, 0)),
        ),
        compiler_params=pltpu.CompilerParams(
            dimension_semantics=("parallel",),
        ),
        cost_estimate=cost,
    )(key2d, x2d)


# ----------------------------------------------------------------------------
# Wrapper: broadcast semantics + lane-dense tiling
# ----------------------------------------------------------------------------
@jax.jit
def match(key: jax.Array, x: jax.Array) -> jax.Array:
    key = jnp.asarray(key)
    x = jnp.asarray(x)
    bshape = jnp.broadcast_shapes(key.shape, x.shape)
    nd = len(bshape)
    out_dtype = x.dtype
    total = math.prod(bshape) if nd else 1
    if total == 0:
        return jnp.zeros(bshape, out_dtype)

    # Align shapes with leading singleton dims.
    kshape = (1,) * (nd - key.ndim) + tuple(key.shape)
    xshape = (1,) * (nd - x.ndim) + tuple(x.shape)
    x_al = x.reshape(xshape)

    # Count trailing axes along which key is broadcast (i.e. constant).
    t = 0
    for d in reversed(range(nd)):
        if kshape[d] == 1:
            t += 1
        else:
            break
    lane = math.prod(bshape[nd - t:]) if t > 0 else 1
    rows = math.prod(bshape[:nd - t]) if nd - t > 0 else 1

    if xshape != bshape:
        # TODO(synk): express x broadcasting through the BlockSpec index_map
        # (return block 0 along broadcast axes) instead of materializing.
        x_full = jnp.broadcast_to(x_al, bshape)
    else:
        x_full = x_al

    if t > 0 and (lane % 128 == 0 or lane >= 128):
        # Fast path: key is constant per row -> pass it as an (R, 1) int32
        # column; no full-size key materialization in HBM.  Lane need not be a
        # multiple of 128: the lane dim is the full extent of the 2-D view.
        f = 1
        while lane > 2048 and lane % 256 == 0:
            # Fold extra width into rows: keeps tiles bounded and the grid
            # long enough to pipeline / shard across TensorCores.
            lane //= 2
            rows *= 2
            f *= 2
        key_col = jnp.broadcast_to(
            key.reshape(kshape), bshape[:nd - t] + (1,) * t
        ).reshape(-1, 1).astype(jnp.int32)
        if f > 1:
            key_col = jnp.broadcast_to(
                key_col[:, None, :], (rows // f, f, 1)).reshape(rows, 1)
        x2d = x_full.reshape(rows, lane)
        lane_pad = _round_up(lane, 128)
        # Key column pads to one vreg row per 8 sublanes (~512 B/row).
        bytes_per_row = (lane_pad * (x.dtype.itemsize
                                     + jnp.dtype(out_dtype).itemsize) + 512)
        align = _row_align(x.dtype, out_dtype, jnp.int32)
        row_blk = _choose_row_block(rows, bytes_per_row, align)
        out2d = _run(key_col, x2d, row_blk, out_dtype)
        return out2d.reshape(bshape)

    # Fallback: key varies inside what would be a lane row (or lanes too
    # narrow).  Materialize the broadcast key at 1 B/elem (int8); clip so
    # values outside int8 range cannot wrap onto a case id.
    key_full = jnp.clip(
        jnp.broadcast_to(key.reshape(kshape), bshape).astype(jnp.int32),
        -128, 127).astype(jnp.int8)
    flat_x = x_full.reshape(-1)
    flat_k = key_full.reshape(-1)
    lane2 = 128
    padded = _round_up(total, lane2)
    if padded != total:
        flat_x = jnp.pad(flat_x, (0, padded - total))
        flat_k = jnp.pad(flat_k, (0, padded - total))
    while lane2 < 2048 and padded % (lane2 * 2) == 0:
        lane2 *= 2                       # widen lane-dense slab (unmasked vst)
    rows2 = padded // lane2
    bytes_per_row = lane2 * (x.dtype.itemsize
                             + jnp.dtype(out_dtype).itemsize + 1)
    align = _row_align(x.dtype, out_dtype, jnp.int8)
    row_blk = _choose_row_block(rows2, bytes_per_row, align)
    out2d = _run(flat_k.reshape(rows2, lane2),
                 flat_x.reshape(rows2, lane2), row_blk, out_dtype)
    out_flat = out2d.reshape(padded)
    if padded != total:
        out_flat = out_flat[:total]
    return out_flat.reshape(bshape)


# ----------------------------------------------------------------------------
# Reference (pure JAX) for sanity checks
# ----------------------------------------------------------------------------
def match_ref(key, x):
    bshape = jnp.broadcast_shapes(key.shape, x.shape)
    key_b = jnp.broadcast_to(key, bshape)
    x_b = jnp.broadcast_to(x, bshape).astype(jnp.float32)
    out = DEFAULT(x_b)
    for k, fn in CASES.items():
        out = jnp.where(key_b == k, fn(x_b), out)
    return out.astype(x.dtype)


if __name__ == "__main__":
    rng = jax.random.PRNGKey(0)
    k1, k2, k3, k4, k5, k6 = jax.random.split(rng, 6)

    # 1) Primary example: per-(batch, channel) routing key (fast path).
    B, C, H, W = 2, 4, 16, 16
    key = jax.random.randint(k1, (B, C, 1, 1), 0, 4, dtype=jnp.int32)  # 3->default
    x = jax.random.normal(k2, (B, C, H, W), dtype=jnp.float32)
    out = jax.block_until_ready(match(key, x))
    assert out.shape == (B, C, H, W) and out.dtype == jnp.float32
    assert jnp.allclose(out, match_ref(key, x), atol=1e-5, rtol=1e-5)

    # 2) Larger shape exercising a multi-step "parallel" grid (fast path).
    B2, C2, H2, W2 = 4, 8, 32, 32
    key2 = jax.random.randint(k3, (B2, C2, 1, 1), 0, 4, dtype=jnp.int32)
    x2 = jax.random.normal(k4, (B2, C2, H2, W2), dtype=jnp.float32)
    out2 = jax.block_until_ready(match(key2, x2))
    assert jnp.allclose(out2, match_ref(key2, x2), atol=1e-5, rtol=1e-5)

    # 3) Key varying inside a row -> int8-key lane-dense fallback path.
    key3 = jax.random.randint(k3, (B, C, H, 1), 0, 4, dtype=jnp.int32)
    out3 = jax.block_until_ready(match(key3, x))
    assert jnp.allclose(out3, match_ref(key3, x), atol=1e-5, rtol=1e-5)

    # 4) Fast path with lane >= 128 but not a multiple of 128 (full-extent lane).
    key4 = jax.random.randint(k5, (B, C, 1, 1), 0, 4, dtype=jnp.int32)
    x4 = jax.random.normal(k6, (B, C, 13, 17), dtype=jnp.float32)
    out4 = jax.block_until_ready(match(key4, x4))
    assert jnp.allclose(out4, match_ref(key4, x4), atol=1e-5, rtol=1e-5)

    # 5) Fully varying key, total not a multiple of 128 -> padded fallback.
    key5 = jax.random.randint(k1, (3, 5, 7), 0, 6, dtype=jnp.int32)
    x5 = jax.random.normal(k2, (3, 5, 7), dtype=jnp.float32)
    out5 = jax.block_until_ready(match(key5, x5))
    assert jnp.allclose(out5, match_ref(key5, x5), atol=1e-5, rtol=1e-5)

    # 6) bf16 input: output dtype follows x, compute in f32 inside the kernel.
    x6 = jax.random.normal(k4, (B, C, H, W), dtype=jnp.bfloat16)
    out6 = jax.block_until_ready(match(key, x6))
    assert out6.dtype == jnp.bfloat16
    assert jnp.allclose(out6.astype(jnp.float32),
                        match_ref(key, x6).astype(jnp.float32),
                        atol=3e-2, rtol=3e-2)

    print("KERNEL_OK")
</pallas_src>

<mosaic_0001>
module attributes {stable_mosaic.version = 11 : i64} {
  func.func @_match_kernel(%arg0: i32, %arg1: memref<8x1xi32, #tpu.memory_space<vmem>>, %arg2: memref<8x256xf32, #tpu.memory_space<vmem>>, %arg3: memref<8x256xf32, #tpu.memory_space<vmem>>) attributes {dimension_semantics = [#tpu.dimension_semantics<parallel>], iteration_bounds = array<i64: 1>, scalar_prefetch = 0 : i64, scratch_operands = 0 : i64, tpu.core_type = #tpu.core_type<tc>, window_params = [{transform_indices = @transform_0, window_bounds = array<i64: 8, 1>}, {transform_indices = @transform_1, window_bounds = array<i64: 8, 256>}, {transform_indices = @transform_2, window_bounds = array<i64: 8, 256>}]} {
    %c0 = arith.constant 0 : index
    %c0_0 = arith.constant 0 : index
    %0 = vector.load %arg2[%c0, %c0_0] : memref<8x256xf32, #tpu.memory_space<vmem>>, vector<8x256xf32>
    %c0_1 = arith.constant 0 : index
    %c0_2 = arith.constant 0 : index
    %1 = vector.load %arg1[%c0_1, %c0_2] : memref<8x1xi32, #tpu.memory_space<vmem>>, vector<8x1xi32>
    %2 = vector.shape_cast %1 : vector<8x1xi32> to vector<8x1xi32>
    %3 = vector.broadcast %2 : vector<8x1xi32> to vector<8x256xi32>
    %cst = arith.constant 0.000000e+00 : f32
    %4 = vector.broadcast %cst : f32 to vector<8x256xf32>
    %5 = arith.subf %4, %0 : vector<8x256xf32>
    %c0_i32 = arith.constant 0 : i32
    %6 = vector.broadcast %c0_i32 : i32 to vector<8x256xi32>
    %7 = arith.cmpi eq, %3, %6 : vector<8x256xi32>
    %8 = arith.mulf %0, %0 : vector<8x256xf32>
    %9 = arith.select %7, %8, %5 : vector<8x256xi1>, vector<8x256xf32>
    %c1_i32 = arith.constant 1 : i32
    %10 = vector.broadcast %c1_i32 : i32 to vector<8x256xi32>
    %11 = arith.cmpi eq, %3, %10 : vector<8x256xi32>
    %12 = math.exp %0 : vector<8x256xf32>
    %13 = arith.select %11, %12, %9 : vector<8x256xi1>, vector<8x256xf32>
    %c2_i32 = arith.constant 2 : i32
    %14 = vector.broadcast %c2_i32 : i32 to vector<8x256xi32>
    %15 = arith.cmpi eq, %3, %14 : vector<8x256xi32>
    %cst_3 = arith.constant 2.000000e+00 : f32
    %16 = vector.broadcast %cst_3 : f32 to vector<8x256xf32>
    %17 = arith.mulf %16, %0 : vector<8x256xf32>
    %cst_4 = arith.constant 5.000000e-01 : f32
    %18 = vector.broadcast %cst_4 : f32 to vector<8x256xf32>
    %19 = arith.addf %17, %18 : vector<8x256xf32>
    %20 = arith.select %15, %19, %13 : vector<8x256xi1>, vector<8x256xf32>
    %c0_5 = arith.constant 0 : index
    %c0_6 = arith.constant 0 : index
    %21 = vector.load %arg3[%c0_5, %c0_6] : memref<8x256xf32, #tpu.memory_space<vmem>>, vector<8x256xf32>
    tpu.vector_store %arg3[%c0_5, %c0_6], %20 {strides = array<i32>} : memref<8x256xf32, #tpu.memory_space<vmem>>, vector<8x256xf32>,
    return
  }
  func.func @transform_0(%arg0: i32) -> (i32, i32) {
    %c0_i32 = arith.constant 0 : i32
    %c0_i32_0 = arith.constant 0 : i32
    return %arg0, %c0_i32 : i32, i32
  }
  func.func @transform_1(%arg0: i32) -> (i32, i32) {
    %c0_i32 = arith.constant 0 : i32
    %c0_i32_0 = arith.constant 0 : i32
    return %arg0, %c0_i32 : i32, i32
  }
  func.func @transform_2(%arg0: i32) -> (i32, i32) {
    %c0_i32 = arith.constant 0 : i32
    %c0_i32_0 = arith.constant 0 : i32
    return %arg0, %c0_i32 : i32, i32
  }
}

</mosaic_0001>

<llo_original>
// kernel: match.1
$region0: #{match.1}
  #allocation0 [shape = 'u32[]', space=smem, size = 0x4, offset = 0x4, fixed_abs, tag = 'smem constant byte address 0x4 - core index']
  #allocation1 [shape = 'u32[144,128]{1,0:T(1,128)}', space=vmem, size = 0x12000, scoped, tag = 'internal scratch']
  %s0 = inlined_call_operand.vmem [shape: s32[8,1], index: 0, kind: input, shape index: {}]
  %s1 = inlined_call_operand.vmem [shape: f32[8,256], index: 1, kind: input, shape index: {}]
  %s2 = inlined_call_operand.vmem [shape: f32[8,256], index: 2, kind: output, shape index: {}]
  %s3 = sld [smem:[#allocation0]]
  $region18: #{match.1} parent=0
    _
  %s5 = ssub.s32 1, %s3
  %s6 = scalar_select 0, %s5, %s3
  // Predicated region
  $region2: #{match.1} parent=0 // pred_check
    _
  $region3: #{match.1} parent=0 // pred_check_branch
    %8 = sbr.rel (0) target = $region5
  $region4: #{match.1} parent=0 // pred_region
    _
  $region5: #{match.1} parent=0 // pred_fallthru
    _
  // Predicated region
  $region6: #{match.1} parent=0 // pred_check
    _
  $region7: #{match.1} parent=0 // pred_check_branch
    %10 = sbr.rel (0) target = $region9
  $region8: #{match.1} parent=0 // pred_region
    _
  $region9: #{match.1} parent=0 // pred_fallthru
    _
  %v11 = vld [vmem:[%s1] sm:$0xff]
  %v12 = vld [vmem:[%s1 + $0x8] sm:$0xff]
  %v13 = vld [vmem:[%s0] sm:$0xff]
  %14 = vset.pattern.permute.xlu0 0
  %15 = vperm.xlu0 %14, %v13
  %v16 = vpop.permute.xlu0 %15
  %v17 = vsub.f32 0.0, %v11
  %v18 = vsub.f32 0.0, %v12
  %vm19 = vcmp.eq.s32.totalorder %v16, 0
  %v20 = vmul.f32 %v11, %v11
  %v21 = vmul.f32 %v12, %v12
  %v22 = vsel %vm19, %v20, %v17
  %v23 = vsel %vm19, %v21, %v18
  %vm24 = vcmp.eq.s32.totalorder %v16, 1
  %v25 = vmul.f32 %v11, 1.442695
  %v26 = vpow.pop %v25
  %v27 = vmul.f32 %v12, 1.442695
  %v28 = vpow.pop %v27
  %v29 = vsel %vm24, %v26, %v22
  %v30 = vsel %vm24, %v28, %v23
  %vm31 = vcmp.eq.s32.totalorder %v16, 2
  %v32 = vmul.f32 %v11, 2.0
  %v33 = vmul.f32 %v12, 2.0
  %v34 = vadd.f32 %v32, 0.5
  %v35 = vadd.f32 %v33, 0.5
  %v36 = vsel %vm31, %v34, %v29
  %v37 = vsel %vm31, %v35, %v30
  %38 = vst [vmem:[%s2] sm:$0xff] %v36
  %39 = vst [vmem:[%s2 + $0x8] sm:$0xff] %v37
  // Predicated region
  $region10: #{match.1} parent=0 // pred_check
    _
  $region11: #{match.1} parent=0 // pred_check_branch
    %41 = sbr.rel (0) target = $region13
  $region12: #{match.1} parent=0 // pred_region
    _
  $region13: #{match.1} parent=0 // pred_fallthru
    _
  // Predicated region
  $region14: #{match.1} parent=0 // pred_check
    _
  $region15: #{match.1} parent=0 // pred_check_branch
    %43 = sbr.rel (0) target = $region17
  $region16: #{match.1} parent=0 // pred_region
    _
  $region17: #{match.1} parent=0 // pred_fallthru
    _

</llo_original>
